<compile_context>
chip_gen: v7x
topology: tpu7x:2x2x1
jax: 0.10.0
libtpu: 0.0.40
codegen_flags: <defaults>
</compile_context>

<pallas_src>
import functools

import jax
import jax.numpy as jnp
from jax.experimental import pallas as pl
from jax.experimental.pallas import tpu as pltpu


# ----------------------------------------------------------------------------
# Kernel
# ----------------------------------------------------------------------------
def gfru_kernel(xw_ref, xf_ref, wwT_ref, bw_ref, wfT_ref, bf_ref,
                w1_ref, w2_ref, bwf_ref, out_ref, *, act_dtype):
    cdt = wwT_ref.dtype                      # matmul operand dtype (bf16/f32)

    # --- state_w branch: only one (tm, H) intermediate live at a time -------
    sw = jnp.tanh(
        (jnp.dot(xw_ref[...].astype(cdt), wwT_ref[...],
                 preferred_element_type=jnp.float32)
         + bw_ref[...]).astype(act_dtype))
    # gate contribution of sw: per-row dot with the first H gate weights.
    g = jnp.sum(sw.astype(jnp.float32) * w1_ref[...], axis=-1, keepdims=True)

    # --- state_f branch ------------------------------------------------------
    sf = jnp.tanh(
        (jnp.dot(xf_ref[...].astype(cdt), wfT_ref[...],
                 preferred_element_type=jnp.float32)
         + bf_ref[...]).astype(act_dtype))
    g = g + jnp.sum(sf.astype(jnp.float32) * w2_ref[...], axis=-1, keepdims=True)

    # gamma = sigmoid(g + b)   -> (tm, 1); OOB rows of a partial block are
    # garbage but every row depends only on its own input row and OOB writes
    # are dropped, so results stay correct.
    out_ref[...] = jax.nn.sigmoid(g + bwf_ref[0]).astype(out_ref.dtype)


# ----------------------------------------------------------------------------
# Tiling / VMEM helpers
# ----------------------------------------------------------------------------
def _vmem_capacity_bytes():
    try:
        return int(pltpu.get_tpu_info().vmem_capacity_bytes)
    except Exception:
        return 64 << 20                      # conservative (v7x per-core VMEM)


def _default_act_dtype(compute_dtype):
    """bf16 tanh/bias on v6e/v7x (bf16 VPU/EUP), f32 elsewhere."""
    if jnp.dtype(compute_dtype) != jnp.dtype(jnp.bfloat16):
        return jnp.float32
    try:
        kind = jax.devices()[0].device_kind.lower()
    except Exception:
        kind = ""
    if any(tag in kind for tag in ("v6", "v7", "7x")):
        return jnp.bfloat16
    return jnp.float32


def _tile_vmem_need(tm, H, in_dsize, w_dsize):
    return (2 * 2 * tm * H * in_dsize        # xw/xf tiles, double-buffered
            + 2 * H * H * w_dsize            # Ww^T / Wf^T, single-buffered
            + 4 * H * 4 + 512                # biases + gate weight rows (f32)
            + 2 * tm * H * 4                 # live f32 intermediates (acc+tanh)
            + 2 * 2 * tm * 4)                # (tm,1) output tile, double-buffered


def _pick_tm(M, H, budget, in_dsize, w_dsize):
    if M < 256:
        return M                             # full-dim block (always legal)
    if M == 256:
        return 128                           # keep 2 grid steps for megacore
    for tm in (2048, 1024, 512, 256, 128):   # big blocks amortize step overhead
        if 2 * tm <= M and _tile_vmem_need(tm, H, in_dsize, w_dsize) <= budget:
            return tm
    return 128


# ----------------------------------------------------------------------------
# Wrapper
# ----------------------------------------------------------------------------
def gfru_forward(state_w, state_f, params, *, tm=None,
                 compute_dtype=jnp.bfloat16, act_dtype=None):
    B, S, H = state_w.shape
    M = B * S
    Ww, bw, Wf, bf, Wwf, bwf = params
    assert Wwf.shape == (1, 2 * H)

    in_dsize = jnp.dtype(state_w.dtype).itemsize
    w_dsize = jnp.dtype(compute_dtype).itemsize
    if act_dtype is None:
        act_dtype = _default_act_dtype(compute_dtype)

    phys_vmem = _vmem_capacity_bytes()
    budget = max(phys_vmem - (16 << 20), 24 << 20)   # generation-aware headroom
    if tm is None:
        tm = _pick_tm(M, H, budget, in_dsize, w_dsize)
    if tm < M and tm % 8 != 0:
        raise ValueError(f"tm must be a multiple of 8 when tiling (got {tm})")
    grid = (pl.cdiv(M, tm),)

    # ---- layout plumbing (weights only; activations stay untouched) --------
    xw = state_w.reshape(M, H)                        # (M, H), natural layout
    xf = state_f.reshape(M, H)
    # PyTorch Linear: y = x @ W^T + b   -> pre-transpose the (tiny) weights.
    WwT = Ww.T.astype(compute_dtype)                  # (H, H)
    WfT = Wf.T.astype(compute_dtype)                  # (H, H)
    bw_r = bw.reshape(1, H).astype(jnp.float32)
    bf_r = bf.reshape(1, H).astype(jnp.float32)
    w1 = Wwf[:, :H].reshape(1, H).astype(jnp.float32)  # acts on sw
    w2 = Wwf[:, H:].reshape(1, H).astype(jnp.float32)  # acts on sf
    bwf_s = bwf.reshape(1).astype(jnp.float32)         # SMEM scalar

    vmem_need = _tile_vmem_need(tm, H, in_dsize, w_dsize)
    vmem_limit = int(min(max(vmem_need + (8 << 20), 32 << 20),
                         max(phys_vmem - (8 << 20), 32 << 20)))

    cost = pl.CostEstimate(
        flops=int(4 * M * H * H + 4 * M * H + 4 * M),
        transcendentals=int(2 * M * H + M),
        bytes_accessed=int(2 * M * H * in_dsize + 2 * H * H * w_dsize
                           + 4 * H * 4 + M * in_dsize + 4),
    )

    def build_call(weight_pipeline_mode):
        res_kw = ({} if weight_pipeline_mode is None
                  else {"pipeline_mode": weight_pipeline_mode})
        return pl.pallas_call(
            functools.partial(gfru_kernel, act_dtype=act_dtype),
            out_shape=jax.ShapeDtypeStruct((M, 1), state_w.dtype),
            grid_spec=pltpu.PrefetchScalarGridSpec(
                num_scalar_prefetch=0,
                grid=grid,
                in_specs=[
                    pl.BlockSpec((tm, H), lambda i: (i, 0)),            # state_w
                    pl.BlockSpec((tm, H), lambda i: (i, 0)),            # state_f
                    pl.BlockSpec((H, H), lambda i: (0, 0), **res_kw),   # Ww^T
                    pl.BlockSpec((1, H), lambda i: (0, 0), **res_kw),   # bw
                    pl.BlockSpec((H, H), lambda i: (0, 0), **res_kw),   # Wf^T
                    pl.BlockSpec((1, H), lambda i: (0, 0), **res_kw),   # bf
                    pl.BlockSpec((1, H), lambda i: (0, 0), **res_kw),   # gate w1
                    pl.BlockSpec((1, H), lambda i: (0, 0), **res_kw),   # gate w2
                    pl.BlockSpec(memory_space=pltpu.MemorySpace.SMEM),  # gate b
                ],
                out_specs=pl.BlockSpec((tm, 1), lambda i: (i, 0)),
            ),
            compiler_params=pltpu.CompilerParams(
                dimension_semantics=("parallel",),
                vmem_limit_bytes=vmem_limit),
            cost_estimate=cost,
        )

    operands = (xw, xf, WwT, bw_r, WfT, bf_r, w1, w2, bwf_s)
    try:
        gamma = build_call(pl.Buffered(1))(*operands)
    except Exception:
        # Fallback for JAX versions where single-buffered pipeline_mode on the
        # top-level pallas_call pipeline is not accepted.
        gamma = build_call(None)(*operands)

    return gamma.reshape(B, S, 1)


# ----------------------------------------------------------------------------
# Params / pure-JAX reference
# ----------------------------------------------------------------------------
def init_params(key, hidden_size, initrange=0.1):
    k1, k2, k3 = jax.random.split(key, 3)
    Ww = jax.random.uniform(k1, (hidden_size, hidden_size), jnp.float32,
                            -initrange, initrange)
    bw = jnp.zeros((hidden_size,), jnp.float32)
    Wf = jax.random.uniform(k2, (hidden_size, hidden_size), jnp.float32,
                            -initrange, initrange)
    bf = jnp.zeros((hidden_size,), jnp.float32)
    Wwf = jax.random.uniform(k3, (1, 2 * hidden_size), jnp.float32,
                             -initrange, initrange)
    bwf = jnp.zeros((1,), jnp.float32)
    return (Ww, bw, Wf, bf, Wwf, bwf)


def gfru_reference(state_w, state_f, params):
    Ww, bw, Wf, bf, Wwf, bwf = params
    sw = jnp.tanh(state_w @ Ww.T + bw)
    sf = jnp.tanh(state_f @ Wf.T + bf)
    cat = jnp.concatenate([sw, sf], axis=2)
    return jax.nn.sigmoid(cat @ Wwf.T + bwf)


if __name__ == "__main__":
    # --- primary small-shape check (single block) ---------------------------
    B, S, H = 2, 8, 32
    key = jax.random.PRNGKey(0)
    kp, kw, kf = jax.random.split(key, 3)

    params = init_params(kp, H)
    state_w = jax.random.normal(kw, (B, S, H), jnp.float32)
    state_f = jax.random.normal(kf, (B, S, H), jnp.float32)
    ref = gfru_reference(state_w, state_f, params)

    # f32 operand path (MXU default-precision rounding applies to both kernel
    # and reference, hence the small-but-nonzero tolerance).
    gamma_f32 = jax.block_until_ready(
        gfru_forward(state_w, state_f, params,
                     compute_dtype=jnp.float32, act_dtype=jnp.float32))
    assert gamma_f32.shape == (B, S, 1)
    assert jnp.allclose(gamma_f32, ref, atol=2e-3, rtol=0), "f32 path mismatch"

    # bf16 fast path (default).
    gamma_bf16 = jax.block_until_ready(
        gfru_forward(state_w, state_f, params, compute_dtype=jnp.bfloat16))
    assert gamma_bf16.shape == (B, S, 1)
    assert jnp.allclose(gamma_bf16, ref, atol=2e-2, rtol=0), "bf16 path mismatch"

    # --- tiled path: multi-step grid with a partial final block -------------
    B2, S2, H2 = 4, 100, 128                      # M = 400 -> tm=128, grid=(4,)
    k2p, k2w, k2f = jax.random.split(jax.random.PRNGKey(1), 3)
    params2 = init_params(k2p, H2)
    sw2 = jax.random.normal(k2w, (B2, S2, H2), jnp.float32)
    sf2 = jax.random.normal(k2f, (B2, S2, H2), jnp.float32)
    ref2 = gfru_reference(sw2, sf2, params2)
    got2 = jax.block_until_ready(gfru_forward(sw2, sf2, params2))
    assert got2.shape == (B2, S2, 1)
    assert jnp.allclose(got2, ref2, atol=2e-2, rtol=0), "tiled path mismatch"

    print("KERNEL_OK")
</pallas_src>

<mosaic_0001>
module attributes {stable_mosaic.version = 11 : i64} {
  func.func @gfru_kernel(%arg0: i32, %arg1: memref<16x32xf32, #tpu.memory_space<vmem>>, %arg2: memref<16x32xf32, #tpu.memory_space<vmem>>, %arg3: memref<32x32xf32, #tpu.memory_space<vmem>>, %arg4: memref<1x32xf32, #tpu.memory_space<vmem>>, %arg5: memref<32x32xf32, #tpu.memory_space<vmem>>, %arg6: memref<1x32xf32, #tpu.memory_space<vmem>>, %arg7: memref<1x32xf32, #tpu.memory_space<vmem>>, %arg8: memref<1x32xf32, #tpu.memory_space<vmem>>, %arg9: memref<1xf32, #tpu.memory_space<smem>>, %arg10: memref<16x1xf32, #tpu.memory_space<vmem>>) attributes {dimension_semantics = [#tpu.dimension_semantics<parallel>], iteration_bounds = array<i64: 1>, scalar_prefetch = 0 : i64, scratch_operands = 0 : i64, tpu.core_type = #tpu.core_type<tc>, window_params = [{transform_indices = @transform_0, window_bounds = array<i64: 16, 32>}, {transform_indices = @transform_1, window_bounds = array<i64: 16, 32>}, {pipeline_mode = #tpu.pipeline_mode<synchronous>, transform_indices = @transform_2, window_bounds = array<i64: 32, 32>}, {pipeline_mode = #tpu.pipeline_mode<synchronous>, transform_indices = @transform_3, window_bounds = array<i64: 1, 32>}, {pipeline_mode = #tpu.pipeline_mode<synchronous>, transform_indices = @transform_4, window_bounds = array<i64: 32, 32>}, {pipeline_mode = #tpu.pipeline_mode<synchronous>, transform_indices = @transform_5, window_bounds = array<i64: 1, 32>}, {pipeline_mode = #tpu.pipeline_mode<synchronous>, transform_indices = @transform_6, window_bounds = array<i64: 1, 32>}, {pipeline_mode = #tpu.pipeline_mode<synchronous>, transform_indices = @transform_7, window_bounds = array<i64: 1, 32>}, {transform_indices = @transform_8, window_bounds = array<i64: 1>}, {transform_indices = @transform_9, window_bounds = array<i64: 16, 1>}]} {
    %c0 = arith.constant 0 : index
    %c0_0 = arith.constant 0 : index
    %0 = vector.load %arg1[%c0, %c0_0] : memref<16x32xf32, #tpu.memory_space<vmem>>, vector<16x32xf32>
    %c0_1 = arith.constant 0 : index
    %c0_2 = arith.constant 0 : index
    %1 = vector.load %arg3[%c0_1, %c0_2] : memref<32x32xf32, #tpu.memory_space<vmem>>, vector<32x32xf32>
    %cst = arith.constant dense<0.000000e+00> : vector<16x32xf32>
    %2 = tpu.matmul %0, %1, %cst {dimension_numbers = #tpu.dot_dimension_numbers<[1], [0], [0], [1], [0, 0, 1, 1], [], []>} : vector<16x32xf32>, vector<32x32xf32>, vector<16x32xf32> -> vector<16x32xf32>
    %c0_3 = arith.constant 0 : index
    %c0_4 = arith.constant 0 : index
    %3 = vector.load %arg4[%c0_3, %c0_4] : memref<1x32xf32, #tpu.memory_space<vmem>>, vector<1x32xf32>
    %4 = vector.broadcast %3 : vector<1x32xf32> to vector<16x32xf32>
    %5 = arith.addf %2, %4 : vector<16x32xf32>
    %6 = math.tanh %5 : vector<16x32xf32>
    %c0_5 = arith.constant 0 : index
    %c0_6 = arith.constant 0 : index
    %7 = vector.load %arg7[%c0_5, %c0_6] : memref<1x32xf32, #tpu.memory_space<vmem>>, vector<1x32xf32>
    %8 = vector.broadcast %7 : vector<1x32xf32> to vector<16x32xf32>
    %9 = arith.mulf %6, %8 : vector<16x32xf32>
    %cst_7 = arith.constant dense<0.000000e+00> : vector<16xf32>
    %10 = vector.multi_reduction <add>, %9, %cst_7 [1] : vector<16x32xf32> to vector<16xf32>
    %11 = vector.shape_cast %10 : vector<16xf32> to vector<16x1xf32>
    %c0_8 = arith.constant 0 : index
    %c0_9 = arith.constant 0 : index
    %12 = vector.load %arg2[%c0_8, %c0_9] : memref<16x32xf32, #tpu.memory_space<vmem>>, vector<16x32xf32>
    %c0_10 = arith.constant 0 : index
    %c0_11 = arith.constant 0 : index
    %13 = vector.load %arg5[%c0_10, %c0_11] : memref<32x32xf32, #tpu.memory_space<vmem>>, vector<32x32xf32>
    %cst_12 = arith.constant dense<0.000000e+00> : vector<16x32xf32>
    %14 = tpu.matmul %12, %13, %cst_12 {dimension_numbers = #tpu.dot_dimension_numbers<[1], [0], [0], [1], [0, 0, 1, 1], [], []>} : vector<16x32xf32>, vector<32x32xf32>, vector<16x32xf32> -> vector<16x32xf32>
    %c0_13 = arith.constant 0 : index
    %c0_14 = arith.constant 0 : index
    %15 = vector.load %arg6[%c0_13, %c0_14] : memref<1x32xf32, #tpu.memory_space<vmem>>, vector<1x32xf32>
    %16 = vector.broadcast %15 : vector<1x32xf32> to vector<16x32xf32>
    %17 = arith.addf %14, %16 : vector<16x32xf32>
    %18 = math.tanh %17 : vector<16x32xf32>
    %c0_15 = arith.constant 0 : index
    %c0_16 = arith.constant 0 : index
    %19 = vector.load %arg8[%c0_15, %c0_16] : memref<1x32xf32, #tpu.memory_space<vmem>>, vector<1x32xf32>
    %20 = vector.broadcast %19 : vector<1x32xf32> to vector<16x32xf32>
    %21 = arith.mulf %18, %20 : vector<16x32xf32>
    %cst_17 = arith.constant dense<0.000000e+00> : vector<16xf32>
    %22 = vector.multi_reduction <add>, %21, %cst_17 [1] : vector<16x32xf32> to vector<16xf32>
    %23 = vector.shape_cast %22 : vector<16xf32> to vector<16x1xf32>
    %24 = arith.addf %11, %23 : vector<16x1xf32>
    %c0_18 = arith.constant 0 : index
    %25 = memref.load %arg9[%c0_18] : memref<1xf32, #tpu.memory_space<smem>>
    %26 = vector.broadcast %25 : f32 to vector<16x1xf32>
    %27 = arith.addf %24, %26 : vector<16x1xf32>
    %28 = arith.negf %27 : vector<16x1xf32>
    %29 = math.exp %28 : vector<16x1xf32>
    %cst_19 = arith.constant 1.000000e+00 : f32
    %30 = vector.broadcast %cst_19 : f32 to vector<16x1xf32>
    %31 = arith.addf %30, %29 : vector<16x1xf32>
    %32 = arith.divf %30, %31 : vector<16x1xf32>
    %c0_20 = arith.constant 0 : index
    %c0_21 = arith.constant 0 : index
    %33 = vector.load %arg10[%c0_20, %c0_21] : memref<16x1xf32, #tpu.memory_space<vmem>>, vector<16x1xf32>
    tpu.vector_store %arg10[%c0_20, %c0_21], %32 {strides = array<i32>} : memref<16x1xf32, #tpu.memory_space<vmem>>, vector<16x1xf32>,
    return
  }
  func.func @transform_0(%arg0: i32) -> (i32, i32) {
    %c0_i32 = arith.constant 0 : i32
    %c0_i32_0 = arith.constant 0 : i32
    return %arg0, %c0_i32 : i32, i32
  }
  func.func @transform_1(%arg0: i32) -> (i32, i32) {
    %c0_i32 = arith.constant 0 : i32
    %c0_i32_0 = arith.constant 0 : i32
    return %arg0, %c0_i32 : i32, i32
  }
  func.func @transform_2(%arg0: i32) -> (i32, i32) {
    %c0_i32 = arith.constant 0 : i32
    %c0_i32_0 = arith.constant 0 : i32
    %c0_i32_1 = arith.constant 0 : i32
    return %c0_i32, %c0_i32_0 : i32, i32
  }
  func.func @transform_3(%arg0: i32) -> (i32, i32) {
    %c0_i32 = arith.constant 0 : i32
    %c0_i32_0 = arith.constant 0 : i32
    %c0_i32_1 = arith.constant 0 : i32
    return %c0_i32, %c0_i32_0 : i32, i32
  }
  func.func @transform_4(%arg0: i32) -> (i32, i32) {
    %c0_i32 = arith.constant 0 : i32
    %c0_i32_0 = arith.constant 0 : i32
    %c0_i32_1 = arith.constant 0 : i32
    return %c0_i32, %c0_i32_0 : i32, i32
  }
  func.func @transform_5(%arg0: i32) -> (i32, i32) {
    %c0_i32 = arith.constant 0 : i32
    %c0_i32_0 = arith.constant 0 : i32
    %c0_i32_1 = arith.constant 0 : i32
    return %c0_i32, %c0_i32_0 : i32, i32
  }
  func.func @transform_6(%arg0: i32) -> (i32, i32) {
    %c0_i32 = arith.constant 0 : i32
    %c0_i32_0 = arith.constant 0 : i32
    %c0_i32_1 = arith.constant 0 : i32
    return %c0_i32, %c0_i32_0 : i32, i32
  }
  func.func @transform_7(%arg0: i32) -> (i32, i32) {
    %c0_i32 = arith.constant 0 : i32
    %c0_i32_0 = arith.constant 0 : i32
    %c0_i32_1 = arith.constant 0 : i32
    return %c0_i32, %c0_i32_0 : i32, i32
  }
  func.func @transform_8(%arg0: i32) -> i32 {
    %c0_i32 = arith.constant 0 : i32
    %c0_i32_0 = arith.constant 0 : i32
    return %c0_i32 : i32
  }
  func.func @transform_9(%arg0: i32) -> (i32, i32) {
    %c0_i32 = arith.constant 0 : i32
    %c0_i32_0 = arith.constant 0 : i32
    return %arg0, %c0_i32 : i32, i32
  }
}

module attributes {stable_mosaic.version = 11 : i64} {
  func.func @gfru_kernel(%arg0: i32, %arg1: memref<16x32xf32, #tpu.memory_space<vmem>>, %arg2: memref<16x32xf32, #tpu.memory_space<vmem>>, %arg3: memref<32x32xf32, #tpu.memory_space<vmem>>, %arg4: memref<1x32xf32, #tpu.memory_space<vmem>>, %arg5: memref<32x32xf32, #tpu.memory_space<vmem>>, %arg6: memref<1x32xf32, #tpu.memory_space<vmem>>, %arg7: memref<1x32xf32, #tpu.memory_space<vmem>>, %arg8: memref<1x32xf32, #tpu.memory_space<vmem>>, %arg9: memref<1xf32, #tpu.memory_space<smem>>, %arg10: memref<16x1xf32, #tpu.memory_space<vmem>>) attributes {dimension_semantics = [#tpu.dimension_semantics<parallel>], iteration_bounds = array<i64: 1>, scalar_prefetch = 0 : i64, scratch_operands = 0 : i64, tpu.core_type = #tpu.core_type<tc>, window_params = [{transform_indices = @transform_0, window_bounds = array<i64: 16, 32>}, {transform_indices = @transform_1, window_bounds = array<i64: 16, 32>}, {pipeline_mode = #tpu.pipeline_mode<synchronous>, transform_indices = @transform_2, window_bounds = array<i64: 32, 32>}, {pipeline_mode = #tpu.pipeline_mode<synchronous>, transform_indices = @transform_3, window_bounds = array<i64: 1, 32>}, {pipeline_mode = #tpu.pipeline_mode<synchronous>, transform_indices = @transform_4, window_bounds = array<i64: 32, 32>}, {pipeline_mode = #tpu.pipeline_mode<synchronous>, transform_indices = @transform_5, window_bounds = array<i64: 1, 32>}, {pipeline_mode = #tpu.pipeline_mode<synchronous>, transform_indices = @transform_6, window_bounds = array<i64: 1, 32>}, {pipeline_mode = #tpu.pipeline_mode<synchronous>, transform_indices = @transform_7, window_bounds = array<i64: 1, 32>}, {transform_indices = @transform_8, window_bounds = array<i64: 1>}, {transform_indices = @transform_9, window_bounds = array<i64: 16, 1>}]} {
    %c0 = arith.constant 0 : index
    %c0_0 = arith.constant 0 : index
    %0 = vector.load %arg1[%c0, %c0_0] : memref<16x32xf32, #tpu.memory_space<vmem>>, vector<16x32xf32>
    %c0_1 = arith.constant 0 : index
    %c0_2 = arith.constant 0 : index
    %1 = vector.load %arg3[%c0_1, %c0_2] : memref<32x32xf32, #tpu.memory_space<vmem>>, vector<32x32xf32>
    %cst = arith.constant dense<0.000000e+00> : vector<16x32xf32>
    %2 = tpu.matmul %0, %1, %cst {dimension_numbers = #tpu.dot_dimension_numbers<[1], [0], [0], [1], [0, 0, 1, 1], [], []>} : vector<16x32xf32>, vector<32x32xf32>, vector<16x32xf32> -> vector<16x32xf32>
    %c0_3 = arith.constant 0 : index
    %c0_4 = arith.constant 0 : index
    %3 = vector.load %arg4[%c0_3, %c0_4] : memref<1x32xf32, #tpu.memory_space<vmem>>, vector<1x32xf32>
    %4 = vector.broadcast %3 : vector<1x32xf32> to vector<16x32xf32>
    %5 = arith.addf %2, %4 : vector<16x32xf32>
    %6 = math.tanh %5 : vector<16x32xf32>
    %c0_5 = arith.constant 0 : index
    %c0_6 = arith.constant 0 : index
    %7 = vector.load %arg7[%c0_5, %c0_6] : memref<1x32xf32, #tpu.memory_space<vmem>>, vector<1x32xf32>
    %8 = vector.broadcast %7 : vector<1x32xf32> to vector<16x32xf32>
    %9 = arith.mulf %6, %8 : vector<16x32xf32>
    %cst_7 = arith.constant dense<0.000000e+00> : vector<16xf32>
    %10 = vector.multi_reduction <add>, %9, %cst_7 [1] : vector<16x32xf32> to vector<16xf32>
    %11 = vector.shape_cast %10 : vector<16xf32> to vector<16x1xf32>
    %c0_8 = arith.constant 0 : index
    %c0_9 = arith.constant 0 : index
    %12 = vector.load %arg2[%c0_8, %c0_9] : memref<16x32xf32, #tpu.memory_space<vmem>>, vector<16x32xf32>
    %c0_10 = arith.constant 0 : index
    %c0_11 = arith.constant 0 : index
    %13 = vector.load %arg5[%c0_10, %c0_11] : memref<32x32xf32, #tpu.memory_space<vmem>>, vector<32x32xf32>
    %cst_12 = arith.constant dense<0.000000e+00> : vector<16x32xf32>
    %14 = tpu.matmul %12, %13, %cst_12 {dimension_numbers = #tpu.dot_dimension_numbers<[1], [0], [0], [1], [0, 0, 1, 1], [], []>} : vector<16x32xf32>, vector<32x32xf32>, vector<16x32xf32> -> vector<16x32xf32>
    %c0_13 = arith.constant 0 : index
    %c0_14 = arith.constant 0 : index
    %15 = vector.load %arg6[%c0_13, %c0_14] : memref<1x32xf32, #tpu.memory_space<vmem>>, vector<1x32xf32>
    %16 = vector.broadcast %15 : vector<1x32xf32> to vector<16x32xf32>
    %17 = arith.addf %14, %16 : vector<16x32xf32>
    %18 = math.tanh %17 : vector<16x32xf32>
    %c0_15 = arith.constant 0 : index
    %c0_16 = arith.constant 0 : index
    %19 = vector.load %arg8[%c0_15, %c0_16] : memref<1x32xf32, #tpu.memory_space<vmem>>, vector<1x32xf32>
    %20 = vector.broadcast %19 : vector<1x32xf32> to vector<16x32xf32>
    %21 = arith.mulf %18, %20 : vector<16x32xf32>
    %cst_17 = arith.constant dense<0.000000e+00> : vector<16xf32>
    %22 = vector.multi_reduction <add>, %21, %cst_17 [1] : vector<16x32xf32> to vector<16xf32>
    %23 = vector.shape_cast %22 : vector<16xf32> to vector<16x1xf32>
    %24 = arith.addf %11, %23 : vector<16x1xf32>
    %c0_18 = arith.constant 0 : index
    %25 = memref.load %arg9[%c0_18] : memref<1xf32, #tpu.memory_space<smem>>
    %26 = vector.broadcast %25 : f32 to vector<16x1xf32>
    %27 = arith.addf %24, %26 : vector<16x1xf32>
    %28 = arith.negf %27 : vector<16x1xf32>
    %29 = math.exp %28 : vector<16x1xf32>
    %cst_19 = arith.constant 1.000000e+00 : f32
    %30 = vector.broadcast %cst_19 : f32 to vector<16x1xf32>
    %31 = arith.addf %30, %29 : vector<16x1xf32>
    %32 = arith.divf %30, %31 : vector<16x1xf32>
    %c0_20 = arith.constant 0 : index
    %c0_21 = arith.constant 0 : index
    %33 = vector.load %arg10[%c0_20, %c0_21] : memref<16x1xf32, #tpu.memory_space<vmem>>, vector<16x1xf32>
    tpu.vector_store %arg10[%c0_20, %c0_21], %32 {strides = array<i32>} : memref<16x1xf32, #tpu.memory_space<vmem>>, vector<16x1xf32>,
    return
  }
  func.func @transform_0(%arg0: i32) -> (i32, i32) {
    %c0_i32 = arith.constant 0 : i32
    %c0_i32_0 = arith.constant 0 : i32
    return %arg0, %c0_i32 : i32, i32
  }
  func.func @transform_1(%arg0: i32) -> (i32, i32) {
    %c0_i32 = arith.constant 0 : i32
    %c0_i32_0 = arith.constant 0 : i32
    return %arg0, %c0_i32 : i32, i32
  }
  func.func @transform_2(%arg0: i32) -> (i32, i32) {
    %c0_i32 = arith.constant 0 : i32
    %c0_i32_0 = arith.constant 0 : i32
    %c0_i32_1 = arith.constant 0 : i32
    return %c0_i32, %c0_i32_0 : i32, i32
  }
  func.func @transform_3(%arg0: i32) -> (i32, i32) {
    %c0_i32 = arith.constant 0 : i32
    %c0_i32_0 = arith.constant 0 : i32
    %c0_i32_1 = arith.constant 0 : i32
    return %c0_i32, %c0_i32_0 : i32, i32
  }
  func.func @transform_4(%arg0: i32) -> (i32, i32) {
    %c0_i32 = arith.constant 0 : i32
    %c0_i32_0 = arith.constant 0 : i32
    %c0_i32_1 = arith.constant 0 : i32
    return %c0_i32, %c0_i32_0 : i32, i32
  }
  func.func @transform_5(%arg0: i32) -> (i32, i32) {
    %c0_i32 = arith.constant 0 : i32
    %c0_i32_0 = arith.constant 0 : i32
    %c0_i32_1 = arith.constant 0 : i32
    return %c0_i32, %c0_i32_0 : i32, i32
  }
  func.func @transform_6(%arg0: i32) -> (i32, i32) {
    %c0_i32 = arith.constant 0 : i32
    %c0_i32_0 = arith.constant 0 : i32
    %c0_i32_1 = arith.constant 0 : i32
    return %c0_i32, %c0_i32_0 : i32, i32
  }
  func.func @transform_7(%arg0: i32) -> (i32, i32) {
    %c0_i32 = arith.constant 0 : i32
    %c0_i32_0 = arith.constant 0 : i32
    %c0_i32_1 = arith.constant 0 : i32
    return %c0_i32, %c0_i32_0 : i32, i32
  }
  func.func @transform_8(%arg0: i32) -> i32 {
    %c0_i32 = arith.constant 0 : i32
    %c0_i32_0 = arith.constant 0 : i32
    return %c0_i32 : i32
  }
  func.func @transform_9(%arg0: i32) -> (i32, i32) {
    %c0_i32 = arith.constant 0 : i32
    %c0_i32_0 = arith.constant 0 : i32
    return %arg0, %c0_i32 : i32, i32
  }
}

</mosaic_0001>

<llo_original>
// kernel: tpu_custom_call.1
$region0: #{tpu_custom_call.1}
  #allocation0 [shape = 'u32[]', space=smem, size = 0x4, offset = 0x4, fixed_abs, tag = 'smem constant byte address 0x4 - core index']
  #allocation1 [shape = 'u32[144,128]{1,0:T(1,128)}', space=vmem, size = 0x12000, scoped, tag = 'internal scratch']
  #allocation2 [shape = 'f32[1]{0:T(128)S(6)}', space=smem, size = 0x200, scoped, tag = 'scoped memory for tpu_custom_call.1']
  %s0 = inlined_call_operand.hbm [shape: f32[16,32], index: 0, kind: input, shape index: {}]
  %s1 = inlined_call_operand.hbm [shape: f32[16,32], index: 1, kind: input, shape index: {}]
  %s2 = inlined_call_operand.hbm [shape: f32[32,32], index: 2, kind: input, shape index: {}]
  %s3 = inlined_call_operand.vmem [shape: f32[1,32], index: 3, kind: input, shape index: {}]
  %s4 = inlined_call_operand.hbm [shape: f32[32,32], index: 4, kind: input, shape index: {}]
  %s5 = inlined_call_operand.vmem [shape: f32[1,32], index: 5, kind: input, shape index: {}]
  %s6 = inlined_call_operand.vmem [shape: f32[1,32], index: 6, kind: input, shape index: {}]
  %s7 = inlined_call_operand.vmem [shape: f32[1,32], index: 7, kind: input, shape index: {}]
  %s8 = inlined_call_operand.<no memory space> [shape: f32[1], index: 8, kind: input, shape index: {}]
  %s9 = inlined_call_operand.vmem [shape: f32[16,1], index: 9, kind: output, shape index: {}]
  %s10 = sld [smem:[#allocation0]]
  $region62: #{tpu_custom_call.1} parent=0
    _
  %s12 = ssub.s32 1, %s10
  %s13 = scalar_select 0, %s12, %s10
  %14 = sst [smem:[#allocation2]] %s8
  $region1: #{tpu_custom_call.1} parent=0
    #allocation3 [shape = 'u8[8192]{0}', space=vmem, size = 0x2000, scoped, tag = 'input window, operand 0, single buffered']
    #allocation4 [shape = 's32[1]{0}', space=sflag, size = 0x4, scoped, tag = 'scoped memory for tpu_custom_call.1']
    #allocation5 [shape = 'u8[8192]{0}', space=vmem, size = 0x2000, scoped, tag = 'input window, operand 1, single buffered']
    #allocation6 [shape = 's32[1]{0}', space=sflag, size = 0x4, scoped, tag = 'scoped memory for tpu_custom_call.1']
    #allocation7 [shape = 'u8[16384]{0}', space=vmem, size = 0x4000, scoped, tag = 'input window, operand 2, single buffered']
    #allocation8 [shape = 'u8[16384]{0}', space=vmem, size = 0x4000, scoped, tag = 'input window, operand 4, single buffered']
    #allocation9 [shape = 's32[1]{0}', space=sflag, size = 0x4, scoped, tag = 'scoped memory for tpu_custom_call.1']
    %15 = vsyncpa [#allocation4], 0
    %16 = vsyncpa [#allocation6], 0
    %17 = vsyncpa [#allocation9], 0
    // Predicated region
    $region2: #{tpu_custom_call.1} parent=1 // pred_check
      _
    $region3: #{tpu_custom_call.1} parent=1 // pred_check_branch
      %19 = sbr.rel (0) target = $region5
    $region4: #{tpu_custom_call.1} parent=1 // pred_region
      %s21 = ssub.s32 256, 256
      %22 = vsyncadd [#allocation4], %s21
      %s23 = sshll.u32 [#allocation3], 4
      %s24 = int_to_ptr.vmem [resolvable:$true] %s23
      %29 = dma.hbm_to_vmem [thread:$0]  %s0, 256, %s24, [#allocation4], 128, 128, 8
    $region5: #{tpu_custom_call.1} parent=1 // pred_fallthru
      _
    // Predicated region
    $region6: #{tpu_custom_call.1} parent=1 // pred_check
      _
    $region7: #{tpu_custom_call.1} parent=1 // pred_check_branch
      %31 = sbr.rel (0) target = $region9
    $region8: #{tpu_custom_call.1} parent=1 // pred_region
      %s33 = ssub.s32 256, 256
      %34 = vsyncadd [#allocation6], %s33
      %s35 = sshll.u32 [#allocation5], 4
      %s36 = int_to_ptr.vmem [resolvable:$true] %s35
      %41 = dma.hbm_to_vmem [thread:$0]  %s1, 256, %s36, [#allocation6], 128, 128, 8
    $region9: #{tpu_custom_call.1} parent=1 // pred_fallthru
      _
    // Predicated region
    $region10: #{tpu_custom_call.1} parent=1 // pred_check
      _
    $region11: #{tpu_custom_call.1} parent=1 // pred_check_branch
      %43 = sbr.rel (0) target = $region13
    $region12: #{tpu_custom_call.1} parent=1 // pred_region
      %s45 = ssub.s32 512, 512
      %46 = vsyncadd [#allocation6], %s45
      %s47 = sshll.u32 [#allocation7], 4
      %s48 = int_to_ptr.vmem [resolvable:$true] %s47
      %53 = dma.hbm_to_vmem [thread:$0]  %s2, 512, %s48, [#allocation6], 128, 128, 8
    $region13: #{tpu_custom_call.1} parent=1 // pred_fallthru
      _
    // Predicated region
    $region14: #{tpu_custom_call.1} parent=1 // pred_check
      _
    $region15: #{tpu_custom_call.1} parent=1 // pred_check_branch
      %55 = sbr.rel (0) target = $region17
    $region16: #{tpu_custom_call.1} parent=1 // pred_region
      _
    $region17: #{tpu_custom_call.1} parent=1 // pred_fallthru
      _
    // Predicated region
    $region18: #{tpu_custom_call.1} parent=1 // pred_check
      _
    $region19: #{tpu_custom_call.1} parent=1 // pred_check_branch
      %57 = sbr.rel (0) target = $region21
    $region20: #{tpu_custom_call.1} parent=1 // pred_region
      %s59 = ssub.s32 512, 512
      %60 = vsyncadd [#allocation9], %s59
      %s61 = sshll.u32 [#allocation8], 4
      %s62 = int_to_ptr.vmem [resolvable:$true] %s61
      %67 = dma.hbm_to_vmem [thread:$0]  %s4, 512, %s62, [#allocation9], 128, 128, 8
    $region21: #{tpu_custom_call.1} parent=1 // pred_fallthru
      _
    // Predicated region
    $region22: #{tpu_custom_call.1} parent=1 // pred_check
      _
    $region23: #{tpu_custom_call.1} parent=1 // pred_check_branch
      %69 = sbr.rel (0) target = $region25
    $region24: #{tpu_custom_call.1} parent=1 // pred_region
      _
    $region25: #{tpu_custom_call.1} parent=1 // pred_fallthru
      _
    // Predicated region
    $region26: #{tpu_custom_call.1} parent=1 // pred_check
      _
    $region27: #{tpu_custom_call.1} parent=1 // pred_check_branch
      %71 = sbr.rel (0) target = $region29
    $region28: #{tpu_custom_call.1} parent=1 // pred_region
      _
    $region29: #{tpu_custom_call.1} parent=1 // pred_fallthru
      _
    // Predicated region
    $region30: #{tpu_custom_call.1} parent=1 // pred_check
      _
    $region31: #{tpu_custom_call.1} parent=1 // pred_check_branch
      %73 = sbr.rel (0) target = $region33
    $region32: #{tpu_custom_call.1} parent=1 // pred_region
      _
    $region33: #{tpu_custom_call.1} parent=1 // pred_fallthru
      _
    // Predicated region
    $region34: #{tpu_custom_call.1} parent=1 // pred_check
      _
    $region35: #{tpu_custom_call.1} parent=1 // pred_check_branch
      %75 = sbr.rel (0) target = $region37
    $region36: #{tpu_custom_call.1} parent=1 // pred_region
      _
    $region37: #{tpu_custom_call.1} parent=1 // pred_fallthru
      _
    // Predicated region
    $region38: #{tpu_custom_call.1} parent=1 // pred_check
      _
    $region39: #{tpu_custom_call.1} parent=1 // pred_check_branch
      %77 = sbr.rel (0) target = $region41
    $region40: #{tpu_custom_call.1} parent=1 // pred_region
      %78 = dma.done [#allocation4], 256
    $region41: #{tpu_custom_call.1} parent=1 // pred_fallthru
      _
    // Predicated region
    $region42: #{tpu_custom_call.1} parent=1 // pred_check
      _
    $region43: #{tpu_custom_call.1} parent=1 // pred_check_branch
      %80 = sbr.rel (0) target = $region45
    $region44: #{tpu_custom_call.1} parent=1 // pred_region
      %81 = dma.done [#allocation6], 256
    $region45: #{tpu_custom_call.1} parent=1 // pred_fallthru
      _
    // Predicated region
    $region46: #{tpu_custom_call.1} parent=1 // pred_check
      _
    $region47: #{tpu_custom_call.1} parent=1 // pred_check_branch
      %83 = sbr.rel (0) target = $region49
    $region48: #{tpu_custom_call.1} parent=1 // pred_region
      %84 = dma.done [#allocation6], 512
    $region49: #{tpu_custom_call.1} parent=1 // pred_fallthru
      _
    // Predicated region
    $region50: #{tpu_custom_call.1} parent=1 // pred_check
      _
    $region51: #{tpu_custom_call.1} parent=1 // pred_check_branch
      %86 = sbr.rel (0) target = $region53
    $region52: #{tpu_custom_call.1} parent=1 // pred_region
      %87 = dma.done [#allocation9], 512
    $region53: #{tpu_custom_call.1} parent=1 // pred_fallthru
      _
    %v88 = vld [vmem:[#allocation3] sm:$0xff]
    %v89 = vld [vmem:[#allocation3 + $0x8] sm:$0xff]
    %v90 = vld [vmem:[#allocation7] sm:$0xff]
    %v91 = vld [vmem:[#allocation7 + $0x8] sm:$0xff]
    %v92 = vld [vmem:[#allocation7 + $0x10] sm:$0xff]
    %v93 = vld [vmem:[#allocation7 + $0x18] sm:$0xff]
    %v94 = vld [vmem:[%s3] sm:$0x1]
    %v96 = vlaneseq
    %v97 = vshrl.u32 %v96, 7
    %v98 = vsub.s32 0, %v97
    %v99 = vrot.slane %v94, %v98
    %vm101 = vcmask 261120
    %v103 = vsel %vm101, %v88, 0
    %v106 = vsel %vm101, %v89, 0
    %108 = vmatprep.subr.mxu0 0.0
    %109 = vmatpush1.msra.mxu0 %v90
    %110 = vmatprep.subr.mxu0 0.0
    %111 = vmatpush1.msra.mxu0 %v91
    %112 = vmatprep.subr.mxu0 0.0
    %113 = vmatpush1.msra.mxu0 %v92
    %114 = vmatprep.subr.mxu0 0.0
    %115 = vmatpush1.msra.mxu0 %v93
    %116 = vmatprep.subr.mxu0 0.0
    %117 = vmatpush1.msra.mxu0 0.0
    %118 = vmatprep.subr.mxu0 0.0
    %119 = vmatpush1.msra.mxu0 0.0
    %120 = vmatprep.subr.mxu0 0.0
    %121 = vmatpush1.msra.mxu0 0.0
    %122 = vmatprep.subr.mxu0 0.0
    %123 = vmatpush1.msra.mxu0 0.0
    %124 = vmatprep.subr.mxu0 0.0
    %125 = vmatpush1.msra.mxu0 0.0
    %126 = vmatprep.subr.mxu0 0.0
    %127 = vmatpush1.msra.mxu0 0.0
    %128 = vmatprep.subr.mxu0 0.0
    %129 = vmatpush1.msra.mxu0 0.0
    %130 = vmatprep.subr.mxu0 0.0
    %131 = vmatpush1.msra.mxu0 0.0
    %132 = vmatprep.subr.mxu0 0.0
    %133 = vmatpush1.msra.mxu0 0.0
    %134 = vmatprep.subr.mxu0 0.0
    %135 = vmatpush1.msra.mxu0 0.0
    %136 = vmatprep.subr.mxu0 0.0
    %137 = vmatpush1.msra.mxu0 0.0
    %138 = vmatprep.subr.mxu0 0.0
    %139 = vmatpush1.msra.mxu0 0.0
    %140 = vmatprep.subr.mxu0 0.0
    %141 = vmatpush1.msra.mxu0 0.0
    %142 = vmatprep.subr.mxu0 0.0
    %143 = vmatpush1.msra.mxu0 0.0
    %144 = vmatprep.subr.mxu0 0.0
    %145 = vmatpush1.msra.mxu0 0.0
    %146 = vmatprep.subr.mxu0 0.0
    %147 = vmatpush1.msra.mxu0 0.0
    %148 = vmatprep.subr.mxu0 0.0
    %149 = vmatpush1.msra.mxu0 0.0
    %150 = vmatprep.subr.mxu0 0.0
    %151 = vmatpush1.msra.mxu0 0.0
    %152 = vmatprep.subr.mxu0 0.0
    %153 = vmatpush1.msra.mxu0 0.0
    %154 = vmatprep.subr.mxu0 0.0
    %155 = vmatpush1.msra.mxu0 0.0
    %156 = vmatprep.subr.mxu0 0.0
    %157 = vmatpush1.msra.mxu0 0.0
    %158 = vmatprep.subr.mxu0 0.0
    %159 = vmatpush1.msra.mxu0 0.0
    %160 = vmatprep.subr.mxu0 0.0
    %161 = vmatpush1.msra.mxu0 0.0
    %162 = vmatprep.subr.mxu0 0.0
    %163 = vmatpush1.msra.mxu0 0.0
    %164 = vmatprep.subr.mxu0 0.0
    %165 = vmatpush1.msra.mxu0 0.0
    %166 = vmatprep.subr.mxu0 0.0
    %167 = vmatpush1.msra.mxu0 0.0
    %168 = vmatprep.subr.mxu0 0.0
    %169 = vmatpush1.msra.mxu0 0.0
    %170 = vmatprep.subr.mxu0 0.0
    %171 = vmatpush1.msra.mxu0 0.0
    %172 = vmatprep.mubr.f32.mxu0 0.0
    %173 = vmatmul.mubr.f32.gmra.mrb[0].mxu0 %v103
    %v174 = vpop.f32.mrb[0].mxu0
    %v175 = vadd.f32 %v99, %v174
    %v176 = vpop.f32.mrb[0].mxu0
    %177 = vmatprep.mubr.f32.mxu0 0.0
    %178 = vmatmul.mubr.f32.gmra.mrb[0].mxu0 %v106
    %v179 = vpop.f32.mrb[0].mxu0
    %v180 = vadd.f32 %v99, %v179
    %v181 = vpop.f32.mrb[0].mxu0
    %182 = vdwg.mxu0
    %v183 = vtanh.pop %v175
    %v184 = vtanh.pop %v180
    %v185 = vld [vmem:[%s6] sm:$0x1]
    %v187 = vlaneseq
    %v188 = vshrl.u32 %v187, 7
    %v189 = vsub.s32 0, %v188
    %v190 = vrot.slane %v185, %v189
    %v192 = vmul.f32 %v183, %v190
    %v193 = vmul.f32 %v184, %v190
    %v194 = vsel %vm101, %v192, 0.0
    %195 = vadd.xlane.f32.xlu0 %v194
    %v196 = vpop.xlane.xlu0 %195
    %v197 = vsel %vm101, %v193, 0.0
    %198 = vadd.xlane.f32.xlu0 %v197
    %v199 = vpop.xlane.xlu0 %198
    %v200 = vld [vmem:[#allocation5] sm:$0xff]
    %v201 = vld [vmem:[#allocation5 + $0x8] sm:$0xff]
    %v202 = vld [vmem:[#allocation8] sm:$0xff]
    %v203 = vld [vmem:[#allocation8 + $0x8] sm:$0xff]
    %v204 = vld [vmem:[#allocation8 + $0x10] sm:$0xff]
    %v205 = vld [vmem:[#allocation8 + $0x18] sm:$0xff]
    %v206 = vld [vmem:[%s5] sm:$0x1]
    %v208 = vlaneseq
    %v209 = vshrl.u32 %v208, 7
    %v210 = vsub.s32 0, %v209
    %v211 = vrot.slane %v206, %v210
    %v214 = vsel %vm101, %v200, 0
    %v217 = vsel %vm101, %v201, 0
    %219 = vmatprep.subr.mxu0 0.0
    %220 = vmatpush1.msra.mxu0 %v202
    %221 = vmatprep.subr.mxu0 0.0
    %222 = vmatpush1.msra.mxu0 %v203
    %223 = vmatprep.subr.mxu0 0.0
    %224 = vmatpush1.msra.mxu0 %v204
    %225 = vmatprep.subr.mxu0 0.0
    %226 = vmatpush1.msra.mxu0 %v205
    %227 = vmatprep.subr.mxu0 0.0
    %228 = vmatpush1.msra.mxu0 0.0
    %229 = vmatprep.subr.mxu0 0.0
    %230 = vmatpush1.msra.mxu0 0.0
    %231 = vmatprep.subr.mxu0 0.0
    %232 = vmatpush1.msra.mxu0 0.0
    %233 = vmatprep.subr.mxu0 0.0
    %234 = vmatpush1.msra.mxu0 0.0
    %235 = vmatprep.subr.mxu0 0.0
    %236 = vmatpush1.msra.mxu0 0.0
    %237 = vmatprep.subr.mxu0 0.0
    %238 = vmatpush1.msra.mxu0 0.0
    %239 = vmatprep.subr.mxu0 0.0
    %240 = vmatpush1.msra.mxu0 0.0
    %241 = vmatprep.subr.mxu0 0.0
    %242 = vmatpush1.msra.mxu0 0.0
    %243 = vmatprep.subr.mxu0 0.0
    %244 = vmatpush1.msra.mxu0 0.0
    %245 = vmatprep.subr.mxu0 0.0
    %246 = vmatpush1.msra.mxu0 0.0
    %247 = vmatprep.subr.mxu0 0.0
    %248 = vmatpush1.msra.mxu0 0.0
    %249 = vmatprep.subr.mxu0 0.0
    %250 = vmatpush1.msra.mxu0 0.0
    %251 = vmatprep.subr.mxu0 0.0
    %252 = vmatpush1.msra.mxu0 0.0
    %253 = vmatprep.subr.mxu0 0.0
    %254 = vmatpush1.msra.mxu0 0.0
    %255 = vmatprep.subr.mxu0 0.0
    %256 = vmatpush1.msra.mxu0 0.0
    %257 = vmatprep.subr.mxu0 0.0
    %258 = vmatpush1.msra.mxu0 0.0
    %259 = vmatprep.subr.mxu0 0.0
    %260 = vmatpush1.msra.mxu0 0.0
    %261 = vmatprep.subr.mxu0 0.0
    %262 = vmatpush1.msra.mxu0 0.0
    %263 = vmatprep.subr.mxu0 0.0
    %264 = vmatpush1.msra.mxu0 0.0
    %265 = vmatprep.subr.mxu0 0.0
    %266 = vmatpush1.msra.mxu0 0.0
    %267 = vmatprep.subr.mxu0 0.0
    %268 = vmatpush1.msra.mxu0 0.0
    %269 = vmatprep.subr.mxu0 0.0
    %270 = vmatpush1.msra.mxu0 0.0
    %271 = vmatprep.subr.mxu0 0.0
    %272 = vmatpush1.msra.mxu0 0.0
    %273 = vmatprep.subr.mxu0 0.0
    %274 = vmatpush1.msra.mxu0 0.0
    %275 = vmatprep.subr.mxu0 0.0
    %276 = vmatpush1.msra.mxu0 0.0
    %277 = vmatprep.subr.mxu0 0.0
    %278 = vmatpush1.msra.mxu0 0.0
    %279 = vmatprep.subr.mxu0 0.0
    %280 = vmatpush1.msra.mxu0 0.0
    %281 = vmatprep.subr.mxu0 0.0
    %282 = vmatpush1.msra.mxu0 0.0
    %283 = vmatprep.mubr.f32.mxu0 0.0
    %284 = vmatmul.mubr.f32.gmra.mrb[0].mxu0 %v214
    %v285 = vpop.f32.mrb[0].mxu0
    %v286 = vadd.f32 %v211, %v285
    %v287 = vpop.f32.mrb[0].mxu0
    %288 = vmatprep.mubr.f32.mxu0 0.0
    %289 = vmatmul.mubr.f32.gmra.mrb[0].mxu0 %v217
    %v290 = vpop.f32.mrb[0].mxu0
    %v291 = vadd.f32 %v211, %v290
    %v292 = vpop.f32.mrb[0].mxu0
    %293 = vdwg.mxu0
    %v294 = vtanh.pop %v286
    %v295 = vtanh.pop %v291
    %v296 = vld [vmem:[%s7] sm:$0x1]
    %v298 = vlaneseq
    %v299 = vshrl.u32 %v298, 7
    %v300 = vsub.s32 0, %v299
    %v301 = vrot.slane %v296, %v300
    %v303 = vmul.f32 %v294, %v301
    %v304 = vmul.f32 %v295, %v301
    %v305 = vsel %vm101, %v303, 0.0
    %306 = vadd.xlane.f32.xlu0 %v305
    %v307 = vpop.xlane.xlu0 %306
    %v308 = vsel %vm101, %v304, 0.0
    %309 = vadd.xlane.f32.xlu0 %v308
    %v310 = vpop.xlane.xlu0 %309
    %v311 = vadd.f32 %v196, %v307
    %v312 = vadd.f32 %v199, %v310
    %s313 = sld [smem:[#allocation2]]
    %v314 = vstv %s313
    %v315 = vadd.f32 %v311, %v314
    %v316 = vadd.f32 %v312, %v314
    %v317 = vxor.u32 %v315, 2147483648
    %v318 = vxor.u32 %v316, 2147483648
    %v319 = vmul.f32 %v317, 1.442695
    %v320 = vpow.pop %v319
    %v321 = vmul.f32 %v318, 1.442695
    %v322 = vpow.pop %v321
    %v323 = vadd.f32 %v320, 1.0
    %v324 = vadd.f32 %v322, 1.0
    %v325 = vrcp.pop %v323
    %v326 = vmul.f32 1.0, %v325
    %v327 = vrcp.pop %v324
    %v328 = vmul.f32 1.0, %v327
    %vm329 = vcmask 7168
    %330 = vst.msk [vmem:[%s9] sm:$0xff] %vm329, %v326
    %331 = vst.msk [vmem:[%s9 + $0x8] sm:$0xff] %vm329, %v328
    // Predicated region
    $region54: #{tpu_custom_call.1} parent=1 // pred_check
      _
    $region55: #{tpu_custom_call.1} parent=1 // pred_check_branch
      %333 = sbr.rel (0) target = $region57
    $region56: #{tpu_custom_call.1} parent=1 // pred_region
      _
    $region57: #{tpu_custom_call.1} parent=1 // pred_fallthru
      _
    // Predicated region
    $region58: #{tpu_custom_call.1} parent=1 // pred_check
      _
    $region59: #{tpu_custom_call.1} parent=1 // pred_check_branch
      %335 = sbr.rel (0) target = $region61
    $region60: #{tpu_custom_call.1} parent=1 // pred_region
      _
    $region61: #{tpu_custom_call.1} parent=1 // pred_fallthru
      _
    %336 = vsyncpa [#allocation4], 1
    %337 = vsyncpa [#allocation6], 1
    %338 = vsyncpa [#allocation9], 1

// kernel: tpu_custom_call.1
$region0: #{tpu_custom_call.1}
  #allocation0 [shape = 'u32[]', space=smem, size = 0x4, offset = 0x4, fixed_abs, tag = 'smem constant byte address 0x4 - core index']
  #allocation1 [shape = 'u32[144,128]{1,0:T(1,128)}', space=vmem, size = 0x12000, scoped, tag = 'internal scratch']
  #allocation2 [shape = 'f32[1]{0:T(128)S(6)}', space=smem, size = 0x200, scoped, tag = 'scoped memory for tpu_custom_call.1']
  %s0 = inlined_call_operand.hbm [shape: f32[16,32], index: 0, kind: input, shape index: {}]
  %s1 = inlined_call_operand.hbm [shape: f32[16,32], index: 1, kind: input, shape index: {}]
  %s2 = inlined_call_operand.hbm [shape: f32[32,32], index: 2, kind: input, shape index: {}]
  %s3 = inlined_call_operand.vmem [shape: f32[1,32], index: 3, kind: input, shape index: {}]
  %s4 = inlined_call_operand.hbm [shape: f32[32,32], index: 4, kind: input, shape index: {}]
  %s5 = inlined_call_operand.vmem [shape: f32[1,32], index: 5, kind: input, shape index: {}]
  %s6 = inlined_call_operand.vmem [shape: f32[1,32], index: 6, kind: input, shape index: {}]
  %s7 = inlined_call_operand.vmem [shape: f32[1,32], index: 7, kind: input, shape index: {}]
  %s8 = inlined_call_operand.<no memory space> [shape: f32[1], index: 8, kind: input, shape index: {}]
  %s9 = inlined_call_operand.vmem [shape: f32[16,1], index: 9, kind: output, shape index: {}]
  %s10 = sld [smem:[#allocation0]]
  $region62: #{tpu_custom_call.1} parent=0
    _
  %s12 = ssub.s32 1, %s10
  %s13 = scalar_select 0, %s12, %s10
  %14 = sst [smem:[#allocation2]] %s8
  $region1: #{tpu_custom_call.1} parent=0
    #allocation3 [shape = 'u8[8192]{0}', space=vmem, size = 0x2000, scoped, tag = 'input window, operand 0, single buffered']
    #allocation4 [shape = 's32[1]{0}', space=sflag, size = 0x4, scoped, tag = 'scoped memory for tpu_custom_call.1']
    #allocation5 [shape = 'u8[8192]{0}', space=vmem, size = 0x2000, scoped, tag = 'input window, operand 1, single buffered']
    #allocation6 [shape = 's32[1]{0}', space=sflag, size = 0x4, scoped, tag = 'scoped memory for tpu_custom_call.1']
    #allocation7 [shape = 'u8[16384]{0}', space=vmem, size = 0x4000, scoped, tag = 'input window, operand 2, single buffered']
    #allocation8 [shape = 'u8[16384]{0}', space=vmem, size = 0x4000, scoped, tag = 'input window, operand 4, single buffered']
    #allocation9 [shape = 's32[1]{0}', space=sflag, size = 0x4, scoped, tag = 'scoped memory for tpu_custom_call.1']
    %15 = vsyncpa [#allocation4], 0
    %16 = vsyncpa [#allocation6], 0
    %17 = vsyncpa [#allocation9], 0
    // Predicated region
    $region2: #{tpu_custom_call.1} parent=1 // pred_check
      _
    $region3: #{tpu_custom_call.1} parent=1 // pred_check_branch
      %19 = sbr.rel (0) target = $region5
    $region4: #{tpu_custom_call.1} parent=1 // pred_region
      %s21 = ssub.s32 256, 256
      %22 = vsyncadd [#allocation4], %s21
      %s23 = sshll.u32 [#allocation3], 4
      %s24 = int_to_ptr.vmem [resolvable:$true] %s23
      %29 = dma.hbm_to_vmem [thread:$0]  %s0, 256, %s24, [#allocation4], 128, 128, 8
    $region5: #{tpu_custom_call.1} parent=1 // pred_fallthru
      _
    // Predicated region
    $region6: #{tpu_custom_call.1} parent=1 // pred_check
      _
    $region7: #{tpu_custom_call.1} parent=1 // pred_check_branch
      %31 = sbr.rel (0) target = $region9
    $region8: #{tpu_custom_call.1} parent=1 // pred_region
      %s33 = ssub.s32 256, 256
      %34 = vsyncadd [#allocation6], %s33
      %s35 = sshll.u32 [#allocation5], 4
      %s36 = int_to_ptr.vmem [resolvable:$true] %s35
      %41 = dma.hbm_to_vmem [thread:$0]  %s1, 256, %s36, [#allocation6], 128, 128, 8
    $region9: #{tpu_custom_call.1} parent=1 // pred_fallthru
      _
    // Predicated region
    $region10: #{tpu_custom_call.1} parent=1 // pred_check
      _
    $region11: #{tpu_custom_call.1} parent=1 // pred_check_branch
      %43 = sbr.rel (0) target = $region13
    $region12: #{tpu_custom_call.1} parent=1 // pred_region
      %s45 = ssub.s32 512, 512
      %46 = vsyncadd [#allocation6], %s45
      %s47 = sshll.u32 [#allocation7], 4
      %s48 = int_to_ptr.vmem [resolvable:$true] %s47
      %53 = dma.hbm_to_vmem [thread:$0]  %s2, 512, %s48, [#allocation6], 128, 128, 8
    $region13: #{tpu_custom_call.1} parent=1 // pred_fallthru
      _
    // Predicated region
    $region14: #{tpu_custom_call.1} parent=1 // pred_check
      _
    $region15: #{tpu_custom_call.1} parent=1 // pred_check_branch
      %55 = sbr.rel (0) target = $region17
    $region16: #{tpu_custom_call.1} parent=1 // pred_region
      _
    $region17: #{tpu_custom_call.1} parent=1 // pred_fallthru
      _
    // Predicated region
    $region18: #{tpu_custom_call.1} parent=1 // pred_check
      _
    $region19: #{tpu_custom_call.1} parent=1 // pred_check_branch
      %57 = sbr.rel (0) target = $region21
    $region20: #{tpu_custom_call.1} parent=1 // pred_region
      %s59 = ssub.s32 512, 512
      %60 = vsyncadd [#allocation9], %s59
      %s61 = sshll.u32 [#allocation8], 4
      %s62 = int_to_ptr.vmem [resolvable:$true] %s61
      %67 = dma.hbm_to_vmem [thread:$0]  %s4, 512, %s62, [#allocation9], 128, 128, 8
    $region21: #{tpu_custom_call.1} parent=1 // pred_fallthru
      _
    // Predicated region
    $region22: #{tpu_custom_call.1} parent=1 // pred_check
      _
    $region23: #{tpu_custom_call.1} parent=1 // pred_check_branch
      %69 = sbr.rel (0) target = $region25
    $region24: #{tpu_custom_call.1} parent=1 // pred_region
      _
    $region25: #{tpu_custom_call.1} parent=1 // pred_fallthru
      _
    // Predicated region
    $region26: #{tpu_custom_call.1} parent=1 // pred_check
      _
    $region27: #{tpu_custom_call.1} parent=1 // pred_check_branch
      %71 = sbr.rel (0) target = $region29
    $region28: #{tpu_custom_call.1} parent=1 // pred_region
      _
    $region29: #{tpu_custom_call.1} parent=1 // pred_fallthru
      _
    // Predicated region
    $region30: #{tpu_custom_call.1} parent=1 // pred_check
      _
    $region31: #{tpu_custom_call.1} parent=1 // pred_check_branch
      %73 = sbr.rel (0) target = $region33
    $region32: #{tpu_custom_call.1} parent=1 // pred_region
      _
    $region33: #{tpu_custom_call.1} parent=1 // pred_fallthru
      _
    // Predicated region
    $region34: #{tpu_custom_call.1} parent=1 // pred_check
      _
    $region35: #{tpu_custom_call.1} parent=1 // pred_check_branch
      %75 = sbr.rel (0) target = $region37
    $region36: #{tpu_custom_call.1} parent=1 // pred_region
      _
    $region37: #{tpu_custom_call.1} parent=1 // pred_fallthru
      _
    // Predicated region
    $region38: #{tpu_custom_call.1} parent=1 // pred_check
      _
    $region39: #{tpu_custom_call.1} parent=1 // pred_check_branch
      %77 = sbr.rel (0) target = $region41
    $region40: #{tpu_custom_call.1} parent=1 // pred_region
      %78 = dma.done [#allocation4], 256
    $region41: #{tpu_custom_call.1} parent=1 // pred_fallthru
      _
    // Predicated region
    $region42: #{tpu_custom_call.1} parent=1 // pred_check
      _
    $region43: #{tpu_custom_call.1} parent=1 // pred_check_branch
      %80 = sbr.rel (0) target = $region45
    $region44: #{tpu_custom_call.1} parent=1 // pred_region
      %81 = dma.done [#allocation6], 256
    $region45: #{tpu_custom_call.1} parent=1 // pred_fallthru
      _
    // Predicated region
    $region46: #{tpu_custom_call.1} parent=1 // pred_check
      _
    $region47: #{tpu_custom_call.1} parent=1 // pred_check_branch
      %83 = sbr.rel (0) target = $region49
    $region48: #{tpu_custom_call.1} parent=1 // pred_region
      %84 = dma.done [#allocation6], 512
    $region49: #{tpu_custom_call.1} parent=1 // pred_fallthru
      _
    // Predicated region
    $region50: #{tpu_custom_call.1} parent=1 // pred_check
      _
    $region51: #{tpu_custom_call.1} parent=1 // pred_check_branch
      %86 = sbr.rel (0) target = $region53
    $region52: #{tpu_custom_call.1} parent=1 // pred_region
      %87 = dma.done [#allocation9], 512
    $region53: #{tpu_custom_call.1} parent=1 // pred_fallthru
      _
    %v88 = vld [vmem:[#allocation3] sm:$0xff]
    %v89 = vld [vmem:[#allocation3 + $0x8] sm:$0xff]
    %v90 = vld [vmem:[#allocation7] sm:$0xff]
    %v91 = vld [vmem:[#allocation7 + $0x8] sm:$0xff]
    %v92 = vld [vmem:[#allocation7 + $0x10] sm:$0xff]
    %v93 = vld [vmem:[#allocation7 + $0x18] sm:$0xff]
    %v94 = vld [vmem:[%s3] sm:$0x1]
    %v96 = vlaneseq
    %v97 = vshrl.u32 %v96, 7
    %v98 = vsub.s32 0, %v97
    %v99 = vrot.slane %v94, %v98
    %vm101 = vcmask 261120
    %v103 = vsel %vm101, %v88, 0
    %v106 = vsel %vm101, %v89, 0
    %108 = vmatprep.subr.mxu0 0.0
    %109 = vmatpush1.msra.mxu0 %v90
    %110 = vmatprep.subr.mxu0 0.0
    %111 = vmatpush1.msra.mxu0 %v91
    %112 = vmatprep.subr.mxu0 0.0
    %113 = vmatpush1.msra.mxu0 %v92
    %114 = vmatprep.subr.mxu0 0.0
    %115 = vmatpush1.msra.mxu0 %v93
    %116 = vmatprep.subr.mxu0 0.0
    %117 = vmatpush1.msra.mxu0 0.0
    %118 = vmatprep.subr.mxu0 0.0
    %119 = vmatpush1.msra.mxu0 0.0
    %120 = vmatprep.subr.mxu0 0.0
    %121 = vmatpush1.msra.mxu0 0.0
    %122 = vmatprep.subr.mxu0 0.0
    %123 = vmatpush1.msra.mxu0 0.0
    %124 = vmatprep.subr.mxu0 0.0
    %125 = vmatpush1.msra.mxu0 0.0
    %126 = vmatprep.subr.mxu0 0.0
    %127 = vmatpush1.msra.mxu0 0.0
    %128 = vmatprep.subr.mxu0 0.0
    %129 = vmatpush1.msra.mxu0 0.0
    %130 = vmatprep.subr.mxu0 0.0
    %131 = vmatpush1.msra.mxu0 0.0
    %132 = vmatprep.subr.mxu0 0.0
    %133 = vmatpush1.msra.mxu0 0.0
    %134 = vmatprep.subr.mxu0 0.0
    %135 = vmatpush1.msra.mxu0 0.0
    %136 = vmatprep.subr.mxu0 0.0
    %137 = vmatpush1.msra.mxu0 0.0
    %138 = vmatprep.subr.mxu0 0.0
    %139 = vmatpush1.msra.mxu0 0.0
    %140 = vmatprep.subr.mxu0 0.0
    %141 = vmatpush1.msra.mxu0 0.0
    %142 = vmatprep.subr.mxu0 0.0
    %143 = vmatpush1.msra.mxu0 0.0
    %144 = vmatprep.subr.mxu0 0.0
    %145 = vmatpush1.msra.mxu0 0.0
    %146 = vmatprep.subr.mxu0 0.0
    %147 = vmatpush1.msra.mxu0 0.0
    %148 = vmatprep.subr.mxu0 0.0
    %149 = vmatpush1.msra.mxu0 0.0
    %150 = vmatprep.subr.mxu0 0.0
    %151 = vmatpush1.msra.mxu0 0.0
    %152 = vmatprep.subr.mxu0 0.0
    %153 = vmatpush1.msra.mxu0 0.0
    %154 = vmatprep.subr.mxu0 0.0
    %155 = vmatpush1.msra.mxu0 0.0
    %156 = vmatprep.subr.mxu0 0.0
    %157 = vmatpush1.msra.mxu0 0.0
    %158 = vmatprep.subr.mxu0 0.0
    %159 = vmatpush1.msra.mxu0 0.0
    %160 = vmatprep.subr.mxu0 0.0
    %161 = vmatpush1.msra.mxu0 0.0
    %162 = vmatprep.subr.mxu0 0.0
    %163 = vmatpush1.msra.mxu0 0.0
    %164 = vmatprep.subr.mxu0 0.0
    %165 = vmatpush1.msra.mxu0 0.0
    %166 = vmatprep.subr.mxu0 0.0
    %167 = vmatpush1.msra.mxu0 0.0
    %168 = vmatprep.subr.mxu0 0.0
    %169 = vmatpush1.msra.mxu0 0.0
    %170 = vmatprep.subr.mxu0 0.0
    %171 = vmatpush1.msra.mxu0 0.0
    %172 = vmatprep.mubr.f32.mxu0 0.0
    %173 = vmatmul.mubr.f32.gmra.mrb[0].mxu0 %v103
    %v174 = vpop.f32.mrb[0].mxu0
    %v175 = vadd.f32 %v99, %v174
    %v176 = vpop.f32.mrb[0].mxu0
    %177 = vmatprep.mubr.f32.mxu0 0.0
    %178 = vmatmul.mubr.f32.gmra.mrb[0].mxu0 %v106
    %v179 = vpop.f32.mrb[0].mxu0
    %v180 = vadd.f32 %v99, %v179
    %v181 = vpop.f32.mrb[0].mxu0
    %182 = vdwg.mxu0
    %v183 = vtanh.pop %v175
    %v184 = vtanh.pop %v180
    %v185 = vld [vmem:[%s6] sm:$0x1]
    %v187 = vlaneseq
    %v188 = vshrl.u32 %v187, 7
    %v189 = vsub.s32 0, %v188
    %v190 = vrot.slane %v185, %v189
    %v192 = vmul.f32 %v183, %v190
    %v193 = vmul.f32 %v184, %v190
    %v194 = vsel %vm101, %v192, 0.0
    %195 = vadd.xlane.f32.xlu0 %v194
    %v196 = vpop.xlane.xlu0 %195
    %v197 = vsel %vm101, %v193, 0.0
    %198 = vadd.xlane.f32.xlu0 %v197
    %v199 = vpop.xlane.xlu0 %198
    %v200 = vld [vmem:[#allocation5] sm:$0xff]
    %v201 = vld [vmem:[#allocation5 + $0x8] sm:$0xff]
    %v202 = vld [vmem:[#allocation8] sm:$0xff]
    %v203 = vld [vmem:[#allocation8 + $0x8] sm:$0xff]
    %v204 = vld [vmem:[#allocation8 + $0x10] sm:$0xff]
    %v205 = vld [vmem:[#allocation8 + $0x18] sm:$0xff]
    %v206 = vld [vmem:[%s5] sm:$0x1]
    %v208 = vlaneseq
    %v209 = vshrl.u32 %v208, 7
    %v210 = vsub.s32 0, %v209
    %v211 = vrot.slane %v206, %v210
    %v214 = vsel %vm101, %v200, 0
    %v217 = vsel %vm101, %v201, 0
    %219 = vmatprep.subr.mxu0 0.0
    %220 = vmatpush1.msra.mxu0 %v202
    %221 = vmatprep.subr.mxu0 0.0
    %222 = vmatpush1.msra.mxu0 %v203
    %223 = vmatprep.subr.mxu0 0.0
    %224 = vmatpush1.msra.mxu0 %v204
    %225 = vmatprep.subr.mxu0 0.0
    %226 = vmatpush1.msra.mxu0 %v205
    %227 = vmatprep.subr.mxu0 0.0
    %228 = vmatpush1.msra.mxu0 0.0
    %229 = vmatprep.subr.mxu0 0.0
    %230 = vmatpush1.msra.mxu0 0.0
    %231 = vmatprep.subr.mxu0 0.0
    %232 = vmatpush1.msra.mxu0 0.0
    %233 = vmatprep.subr.mxu0 0.0
    %234 = vmatpush1.msra.mxu0 0.0
    %235 = vmatprep.subr.mxu0 0.0
    %236 = vmatpush1.msra.mxu0 0.0
    %237 = vmatprep.subr.mxu0 0.0
    %238 = vmatpush1.msra.mxu0 0.0
    %239 = vmatprep.subr.mxu0 0.0
    %240 = vmatpush1.msra.mxu0 0.0
    %241 = vmatprep.subr.mxu0 0.0
    %242 = vmatpush1.msra.mxu0 0.0
    %243 = vmatprep.subr.mxu0 0.0
    %244 = vmatpush1.msra.mxu0 0.0
    %245 = vmatprep.subr.mxu0 0.0
    %246 = vmatpush1.msra.mxu0 0.0
    %247 = vmatprep.subr.mxu0 0.0
    %248 = vmatpush1.msra.mxu0 0.0
    %249 = vmatprep.subr.mxu0 0.0
    %250 = vmatpush1.msra.mxu0 0.0
    %251 = vmatprep.subr.mxu0 0.0
    %252 = vmatpush1.msra.mxu0 0.0
    %253 = vmatprep.subr.mxu0 0.0
    %254 = vmatpush1.msra.mxu0 0.0
    %255 = vmatprep.subr.mxu0 0.0
    %256 = vmatpush1.msra.mxu0 0.0
    %257 = vmatprep.subr.mxu0 0.0
    %258 = vmatpush1.msra.mxu0 0.0
    %259 = vmatprep.subr.mxu0 0.0
    %260 = vmatpush1.msra.mxu0 0.0
    %261 = vmatprep.subr.mxu0 0.0
    %262 = vmatpush1.msra.mxu0 0.0
    %263 = vmatprep.subr.mxu0 0.0
    %264 = vmatpush1.msra.mxu0 0.0
    %265 = vmatprep.subr.mxu0 0.0
    %266 = vmatpush1.msra.mxu0 0.0
    %267 = vmatprep.subr.mxu0 0.0
    %268 = vmatpush1.msra.mxu0 0.0
    %269 = vmatprep.subr.mxu0 0.0
    %270 = vmatpush1.msra.mxu0 0.0
    %271 = vmatprep.subr.mxu0 0.0
    %272 = vmatpush1.msra.mxu0 0.0
    %273 = vmatprep.subr.mxu0 0.0
    %274 = vmatpush1.msra.mxu0 0.0
    %275 = vmatprep.subr.mxu0 0.0
    %276 = vmatpush1.msra.mxu0 0.0
    %277 = vmatprep.subr.mxu0 0.0
    %278 = vmatpush1.msra.mxu0 0.0
    %279 = vmatprep.subr.mxu0 0.0
    %280 = vmatpush1.msra.mxu0 0.0
    %281 = vmatprep.subr.mxu0 0.0
    %282 = vmatpush1.msra.mxu0 0.0
    %283 = vmatprep.mubr.f32.mxu0 0.0
    %284 = vmatmul.mubr.f32.gmra.mrb[0].mxu0 %v214
    %v285 = vpop.f32.mrb[0].mxu0
    %v286 = vadd.f32 %v211, %v285
    %v287 = vpop.f32.mrb[0].mxu0
    %288 = vmatprep.mubr.f32.mxu0 0.0
    %289 = vmatmul.mubr.f32.gmra.mrb[0].mxu0 %v217
    %v290 = vpop.f32.mrb[0].mxu0
    %v291 = vadd.f32 %v211, %v290
    %v292 = vpop.f32.mrb[0].mxu0
    %293 = vdwg.mxu0
    %v294 = vtanh.pop %v286
    %v295 = vtanh.pop %v291
    %v296 = vld [vmem:[%s7] sm:$0x1]
    %v298 = vlaneseq
    %v299 = vshrl.u32 %v298, 7
    %v300 = vsub.s32 0, %v299
    %v301 = vrot.slane %v296, %v300
    %v303 = vmul.f32 %v294, %v301
    %v304 = vmul.f32 %v295, %v301
    %v305 = vsel %vm101, %v303, 0.0
    %306 = vadd.xlane.f32.xlu0 %v305
    %v307 = vpop.xlane.xlu0 %306
    %v308 = vsel %vm101, %v304, 0.0
    %309 = vadd.xlane.f32.xlu0 %v308
    %v310 = vpop.xlane.xlu0 %309
    %v311 = vadd.f32 %v196, %v307
    %v312 = vadd.f32 %v199, %v310
    %s313 = sld [smem:[#allocation2]]
    %v314 = vstv %s313
    %v315 = vadd.f32 %v311, %v314
    %v316 = vadd.f32 %v312, %v314
    %v317 = vxor.u32 %v315, 2147483648
    %v318 = vxor.u32 %v316, 2147483648
    %v319 = vmul.f32 %v317, 1.442695
    %v320 = vpow.pop %v319
    %v321 = vmul.f32 %v318, 1.442695
    %v322 = vpow.pop %v321
    %v323 = vadd.f32 %v320, 1.0
    %v324 = vadd.f32 %v322, 1.0
    %v325 = vrcp.pop %v323
    %v326 = vmul.f32 1.0, %v325
    %v327 = vrcp.pop %v324
    %v328 = vmul.f32 1.0, %v327
    %vm329 = vcmask 7168
    %330 = vst.msk [vmem:[%s9] sm:$0xff] %vm329, %v326
    %331 = vst.msk [vmem:[%s9 + $0x8] sm:$0xff] %vm329, %v328
    // Predicated region
    $region54: #{tpu_custom_call.1} parent=1 // pred_check
      _
    $region55: #{tpu_custom_call.1} parent=1 // pred_check_branch
      %333 = sbr.rel (0) target = $region57
    $region56: #{tpu_custom_call.1} parent=1 // pred_region
      _
    $region57: #{tpu_custom_call.1} parent=1 // pred_fallthru
      _
    // Predicated region
    $region58: #{tpu_custom_call.1} parent=1 // pred_check
      _
    $region59: #{tpu_custom_call.1} parent=1 // pred_check_branch
      %335 = sbr.rel (0) target = $region61
    $region60: #{tpu_custom_call.1} parent=1 // pred_region
      _
    $region61: #{tpu_custom_call.1} parent=1 // pred_fallthru
      _
    %336 = vsyncpa [#allocation4], 1
    %337 = vsyncpa [#allocation6], 1
    %338 = vsyncpa [#allocation9], 1

</llo_original>
